<compile_context>
chip_gen: v7x
topology: tpu7x:2x2x1
jax: 0.10.0
libtpu: 0.0.40
codegen_flags: <defaults>
</compile_context>

<pallas_src>
import jax
import jax.numpy as jnp
from jax.experimental import pallas as pl
from jax.experimental.pallas import tpu as pltpu

N_STATES = 8        # LunarLander-v3 observation dim
N_ACTIONS = 4       # LunarLander-v3 action dim
N_HIDDEN = 64
OUT_SUB = 8         # output rows padded 4 -> 8 sublanes (sliced off in wrapper)
TILE_LANES = 128    # lane granularity for the batch axis


def _cdiv(a, b):
    return -(-a // b)


def _round_up(a, b):
    return _cdiv(a, b) * b


def qnet_kernel(xT_ref, w1t_ref, b1_ref, w2t_ref, b2_ref, w3t_ref, b3_ref, oT_ref):
    # x^T tile: [N_STATES, TILE_B] f32 -> bf16 for the MXU (f32 accumulate).
    xT = xT_ref[...].astype(jnp.bfloat16)
    # Layer 1: h1^T = W1^T @ x^T  -> [64, TILE_B]
    h1 = jnp.dot(w1t_ref[...], xT, preferred_element_type=jnp.float32)
    h1 = jnp.maximum(h1 + b1_ref[...], 0.0)
    # Layer 2: h2^T = W2^T @ h1^T -> [64, TILE_B]
    h2 = jnp.dot(w2t_ref[...], h1.astype(jnp.bfloat16),
                 preferred_element_type=jnp.float32)
    h2 = jnp.maximum(h2 + b2_ref[...], 0.0)
    # Layer 3: q^T = W3^T @ h2^T  -> [8(padded), TILE_B]
    out = jnp.dot(w3t_ref[...], h2.astype(jnp.bfloat16),
                  preferred_element_type=jnp.float32)
    oT_ref[...] = (out + b3_ref[...]).astype(oT_ref.dtype)


def prepare_params(params):
    """One-time conversion of PyTorch-layout params into kernel layout:
    transposed (feature-major) weights in bf16, biases as f32 columns,
    W3/b3 sublane-padded 4 -> 8 rows."""
    w1, b1, w2, b2, w3, b3 = params
    w1t = jnp.asarray(w1.T, jnp.bfloat16)                        # [64, 8]
    w2t = jnp.asarray(w2.T, jnp.bfloat16)                        # [64, 64]
    w3t = jnp.zeros((OUT_SUB, N_HIDDEN), jnp.bfloat16)
    w3t = w3t.at[:N_ACTIONS, :].set(w3.T.astype(jnp.bfloat16))   # [8, 64]
    b1t = b1.reshape(N_HIDDEN, 1).astype(jnp.float32)            # [64, 1]
    b2t = b2.reshape(N_HIDDEN, 1).astype(jnp.float32)            # [64, 1]
    b3t = jnp.zeros((OUT_SUB, 1), jnp.float32)
    b3t = b3t.at[:N_ACTIONS, :].set(b3.reshape(N_ACTIONS, 1))    # [8, 1]
    return (w1t, b1t, w2t, b2t, w3t, b3t)


def _pick_tile(B, tile_b):
    """Lane-aligned batch tile; guarantees grid >= 2 whenever B > 128."""
    tile_b = max(TILE_LANES, _round_up(tile_b, TILE_LANES))
    if B >= 2 * tile_b:
        return tile_b
    n_lane_blocks = _cdiv(B, TILE_LANES)
    return TILE_LANES * max(1, n_lane_blocks // 2)


def qnet_forward(x, kernel_params, tile_b=256):
    """x: [B, N_STATES] f32. kernel_params: output of prepare_params().
    Returns [B, N_ACTIONS] f32 Q-values."""
    w1t, b1t, w2t, b2t, w3t, b3t = kernel_params
    B = x.shape[0]

    TILE_B = _pick_tile(B, tile_b)
    pad_B = _round_up(B, TILE_B)
    grid = (pad_B // TILE_B,)

    # Only per-call activation plumbing: transpose to feature-major and pad the
    # batch (lane) axis. Weights are already in kernel layout.
    xT = x.T                                   # [N_STATES, B] f32
    if pad_B != B:
        xT = jnp.pad(xT, ((0, 0), (0, pad_B - B)))

    flops = 2 * pad_B * (N_STATES * N_HIDDEN + N_HIDDEN * N_HIDDEN
                         + N_HIDDEN * N_ACTIONS)
    weight_bytes = (N_HIDDEN * N_STATES * 2 + N_HIDDEN * N_HIDDEN * 2
                    + OUT_SUB * N_HIDDEN * 2 + (2 * N_HIDDEN + OUT_SUB) * 4)
    bytes_accessed = pad_B * N_STATES * 4 + weight_bytes + pad_B * OUT_SUB * 4
    cost = pl.CostEstimate(flops=flops, transcendentals=0,
                           bytes_accessed=bytes_accessed)

    outT = pl.pallas_call(
        qnet_kernel,
        out_shape=jax.ShapeDtypeStruct((OUT_SUB, pad_B), jnp.float32),
        grid=grid,
        in_specs=[
            pl.BlockSpec((N_STATES, TILE_B), lambda i: (0, i)),   # x^T tile
            pl.BlockSpec((N_HIDDEN, N_STATES), lambda i: (0, 0)),  # W1^T (resident)
            pl.BlockSpec((N_HIDDEN, 1), lambda i: (0, 0)),         # b1
            pl.BlockSpec((N_HIDDEN, N_HIDDEN), lambda i: (0, 0)),  # W2^T
            pl.BlockSpec((N_HIDDEN, 1), lambda i: (0, 0)),         # b2
            pl.BlockSpec((OUT_SUB, N_HIDDEN), lambda i: (0, 0)),   # W3^T (padded)
            pl.BlockSpec((OUT_SUB, 1), lambda i: (0, 0)),          # b3 (padded)
        ],
        out_specs=pl.BlockSpec((OUT_SUB, TILE_B), lambda i: (0, i)),
        compiler_params=pltpu.CompilerParams(
            dimension_semantics=("parallel",)),   # megacore split on v7x
        cost_estimate=cost,
    )(xT, w1t, b1t, w2t, b2t, w3t, b3t)

    # Drop padded action rows / batch lanes, back to batch-major.
    return outT[:N_ACTIONS, :B].T


def init_params(key):
    """PyTorch nn.Linear-style init: U[-1/sqrt(fan_in), 1/sqrt(fan_in)].
    Weights stored as [in_features, out_features] (y = x @ W + b)."""
    ks = jax.random.split(key, 6)

    def linear(kw, kb, fan_in, fan_out):
        bound = 1.0 / jnp.sqrt(jnp.float32(fan_in))
        w = jax.random.uniform(kw, (fan_in, fan_out), jnp.float32, -bound, bound)
        b = jax.random.uniform(kb, (1, fan_out), jnp.float32, -bound, bound)
        return w, b

    w1, b1 = linear(ks[0], ks[1], N_STATES, N_HIDDEN)
    w2, b2 = linear(ks[2], ks[3], N_HIDDEN, N_HIDDEN)
    w3, b3 = linear(ks[4], ks[5], N_HIDDEN, N_ACTIONS)
    return (w1, b1, w2, b2, w3, b3)


def qnet_reference(x, params):
    """Reference with the same numerics as the kernel (bf16 operands, f32 accum)."""
    w1, b1, w2, b2, w3, b3 = params

    def bf(a):
        return a.astype(jnp.bfloat16).astype(jnp.float32)

    h1 = jnp.maximum(bf(x) @ bf(w1) + b1, 0.0)
    h2 = jnp.maximum(bf(h1) @ bf(w2) + b2, 0.0)
    return bf(h2) @ bf(w3) + b3


if __name__ == "__main__":
    key = jax.random.PRNGKey(0)
    k_params, k_x1, k_x2 = jax.random.split(key, 3)
    params = init_params(k_params)
    kernel_params = prepare_params(params)   # one-time kernel-layout prep

    # Small acting-style batch (single 128-lane tile).
    B_small = 8
    x_small = jax.random.normal(k_x1, (B_small, N_STATES), jnp.float32)
    out_small = jax.block_until_ready(qnet_forward(x_small, kernel_params))
    ref_small = qnet_reference(x_small, params)
    assert out_small.shape == (B_small, N_ACTIONS)
    assert jnp.allclose(out_small, ref_small, atol=1e-2, rtol=1e-2)

    # Replay-minibatch-style batch (non-multiple of tile -> padding + grid >= 2).
    B_big = 300
    x_big = jax.random.normal(k_x2, (B_big, N_STATES), jnp.float32)
    out_big = jax.block_until_ready(qnet_forward(x_big, kernel_params, tile_b=256))
    ref_big = qnet_reference(x_big, params)
    assert out_big.shape == (B_big, N_ACTIONS)
    assert jnp.allclose(out_big, ref_big, atol=1e-2, rtol=1e-2)

    print("KERNEL_OK")
</pallas_src>

<mosaic_0001>
module attributes {stable_mosaic.version = 11 : i64} {
  func.func @qnet_kernel(%arg0: i32, %arg1: memref<8x128xf32, #tpu.memory_space<vmem>>, %arg2: memref<64x8xbf16, #tpu.memory_space<vmem>>, %arg3: memref<64x1xf32, #tpu.memory_space<vmem>>, %arg4: memref<64x64xbf16, #tpu.memory_space<vmem>>, %arg5: memref<64x1xf32, #tpu.memory_space<vmem>>, %arg6: memref<8x64xbf16, #tpu.memory_space<vmem>>, %arg7: memref<8x1xf32, #tpu.memory_space<vmem>>, %arg8: memref<8x128xf32, #tpu.memory_space<vmem>>) attributes {dimension_semantics = [#tpu.dimension_semantics<parallel>], iteration_bounds = array<i64: 1>, scalar_prefetch = 0 : i64, scratch_operands = 0 : i64, tpu.core_type = #tpu.core_type<tc>, window_params = [{transform_indices = @transform_0, window_bounds = array<i64: 8, 128>}, {pipeline_mode = #tpu.pipeline_mode<synchronous>, transform_indices = @transform_1, window_bounds = array<i64: 64, 8>}, {pipeline_mode = #tpu.pipeline_mode<synchronous>, transform_indices = @transform_2, window_bounds = array<i64: 64, 1>}, {pipeline_mode = #tpu.pipeline_mode<synchronous>, transform_indices = @transform_3, window_bounds = array<i64: 64, 64>}, {pipeline_mode = #tpu.pipeline_mode<synchronous>, transform_indices = @transform_4, window_bounds = array<i64: 64, 1>}, {pipeline_mode = #tpu.pipeline_mode<synchronous>, transform_indices = @transform_5, window_bounds = array<i64: 8, 64>}, {pipeline_mode = #tpu.pipeline_mode<synchronous>, transform_indices = @transform_6, window_bounds = array<i64: 8, 1>}, {transform_indices = @transform_7, window_bounds = array<i64: 8, 128>}]} {
    %c0 = arith.constant 0 : index
    %c0_0 = arith.constant 0 : index
    %0 = vector.load %arg1[%c0, %c0_0] : memref<8x128xf32, #tpu.memory_space<vmem>>, vector<8x128xf32>
    %1 = arith.truncf %0 : vector<8x128xf32> to vector<8x128xbf16>
    %c0_1 = arith.constant 0 : index
    %c0_2 = arith.constant 0 : index
    %2 = vector.load %arg2[%c0_1, %c0_2] : memref<64x8xbf16, #tpu.memory_space<vmem>>, vector<64x8xbf16>
    %cst = arith.constant dense<0.000000e+00> : vector<64x128xf32>
    %3 = tpu.matmul %2, %1, %cst {dimension_numbers = #tpu.dot_dimension_numbers<[1], [0], [0], [1], [0, 0, 1, 1], [], []>} : vector<64x8xbf16>, vector<8x128xbf16>, vector<64x128xf32> -> vector<64x128xf32>
    %c0_3 = arith.constant 0 : index
    %c0_4 = arith.constant 0 : index
    %4 = vector.load %arg3[%c0_3, %c0_4] : memref<64x1xf32, #tpu.memory_space<vmem>>, vector<64x1xf32>
    %5 = vector.broadcast %4 : vector<64x1xf32> to vector<64x128xf32>
    %6 = arith.addf %3, %5 : vector<64x128xf32>
    %cst_5 = arith.constant 0.000000e+00 : f32
    %7 = vector.broadcast %cst_5 : f32 to vector<64x128xf32>
    %8 = arith.maximumf %6, %7 : vector<64x128xf32>
    %c0_6 = arith.constant 0 : index
    %c0_7 = arith.constant 0 : index
    %9 = vector.load %arg4[%c0_6, %c0_7] : memref<64x64xbf16, #tpu.memory_space<vmem>>, vector<64x64xbf16>
    %10 = arith.truncf %8 : vector<64x128xf32> to vector<64x128xbf16>
    %cst_8 = arith.constant dense<0.000000e+00> : vector<64x128xf32>
    %11 = tpu.matmul %9, %10, %cst_8 {dimension_numbers = #tpu.dot_dimension_numbers<[1], [0], [0], [1], [0, 0, 1, 1], [], []>} : vector<64x64xbf16>, vector<64x128xbf16>, vector<64x128xf32> -> vector<64x128xf32>
    %c0_9 = arith.constant 0 : index
    %c0_10 = arith.constant 0 : index
    %12 = vector.load %arg5[%c0_9, %c0_10] : memref<64x1xf32, #tpu.memory_space<vmem>>, vector<64x1xf32>
    %13 = vector.broadcast %12 : vector<64x1xf32> to vector<64x128xf32>
    %14 = arith.addf %11, %13 : vector<64x128xf32>
    %cst_11 = arith.constant 0.000000e+00 : f32
    %15 = vector.broadcast %cst_11 : f32 to vector<64x128xf32>
    %16 = arith.maximumf %14, %15 : vector<64x128xf32>
    %c0_12 = arith.constant 0 : index
    %c0_13 = arith.constant 0 : index
    %17 = vector.load %arg6[%c0_12, %c0_13] : memref<8x64xbf16, #tpu.memory_space<vmem>>, vector<8x64xbf16>
    %18 = arith.truncf %16 : vector<64x128xf32> to vector<64x128xbf16>
    %cst_14 = arith.constant dense<0.000000e+00> : vector<8x128xf32>
    %19 = tpu.matmul %17, %18, %cst_14 {dimension_numbers = #tpu.dot_dimension_numbers<[1], [0], [0], [1], [0, 0, 1, 1], [], []>} : vector<8x64xbf16>, vector<64x128xbf16>, vector<8x128xf32> -> vector<8x128xf32>
    %c0_15 = arith.constant 0 : index
    %c0_16 = arith.constant 0 : index
    %20 = vector.load %arg7[%c0_15, %c0_16] : memref<8x1xf32, #tpu.memory_space<vmem>>, vector<8x1xf32>
    %21 = vector.broadcast %20 : vector<8x1xf32> to vector<8x128xf32>
    %22 = arith.addf %19, %21 : vector<8x128xf32>
    %c0_17 = arith.constant 0 : index
    %c0_18 = arith.constant 0 : index
    %23 = vector.load %arg8[%c0_17, %c0_18] : memref<8x128xf32, #tpu.memory_space<vmem>>, vector<8x128xf32>
    tpu.vector_store %arg8[%c0_17, %c0_18], %22 {strides = array<i32>} : memref<8x128xf32, #tpu.memory_space<vmem>>, vector<8x128xf32>,
    return
  }
  func.func @transform_0(%arg0: i32) -> (i32, i32) {
    %c0_i32 = arith.constant 0 : i32
    %c0_i32_0 = arith.constant 0 : i32
    return %c0_i32, %arg0 : i32, i32
  }
  func.func @transform_1(%arg0: i32) -> (i32, i32) {
    %c0_i32 = arith.constant 0 : i32
    %c0_i32_0 = arith.constant 0 : i32
    %c0_i32_1 = arith.constant 0 : i32
    return %c0_i32, %c0_i32_0 : i32, i32
  }
  func.func @transform_2(%arg0: i32) -> (i32, i32) {
    %c0_i32 = arith.constant 0 : i32
    %c0_i32_0 = arith.constant 0 : i32
    %c0_i32_1 = arith.constant 0 : i32
    return %c0_i32, %c0_i32_0 : i32, i32
  }
  func.func @transform_3(%arg0: i32) -> (i32, i32) {
    %c0_i32 = arith.constant 0 : i32
    %c0_i32_0 = arith.constant 0 : i32
    %c0_i32_1 = arith.constant 0 : i32
    return %c0_i32, %c0_i32_0 : i32, i32
  }
  func.func @transform_4(%arg0: i32) -> (i32, i32) {
    %c0_i32 = arith.constant 0 : i32
    %c0_i32_0 = arith.constant 0 : i32
    %c0_i32_1 = arith.constant 0 : i32
    return %c0_i32, %c0_i32_0 : i32, i32
  }
  func.func @transform_5(%arg0: i32) -> (i32, i32) {
    %c0_i32 = arith.constant 0 : i32
    %c0_i32_0 = arith.constant 0 : i32
    %c0_i32_1 = arith.constant 0 : i32
    return %c0_i32, %c0_i32_0 : i32, i32
  }
  func.func @transform_6(%arg0: i32) -> (i32, i32) {
    %c0_i32 = arith.constant 0 : i32
    %c0_i32_0 = arith.constant 0 : i32
    %c0_i32_1 = arith.constant 0 : i32
    return %c0_i32, %c0_i32_0 : i32, i32
  }
  func.func @transform_7(%arg0: i32) -> (i32, i32) {
    %c0_i32 = arith.constant 0 : i32
    %c0_i32_0 = arith.constant 0 : i32
    return %c0_i32, %arg0 : i32, i32
  }
}

</mosaic_0001>

<llo_original>
// kernel: tpu_custom_call.1
$region0: #{tpu_custom_call.1}
  #allocation0 [shape = 'u32[]', space=smem, size = 0x4, offset = 0x4, fixed_abs, tag = 'smem constant byte address 0x4 - core index']
  #allocation1 [shape = 'u32[144,128]{1,0:T(1,128)}', space=vmem, size = 0x12000, scoped, tag = 'internal scratch']
  %s0 = inlined_call_operand.vmem [shape: f32[8,128], index: 0, kind: input, shape index: {}]
  %s1 = inlined_call_operand.vmem [shape: bf16[64,8], index: 1, kind: input, shape index: {}]
  %s2 = inlined_call_operand.vmem [shape: f32[64,1], index: 2, kind: input, shape index: {}]
  %s3 = inlined_call_operand.vmem [shape: bf16[64,64], index: 3, kind: input, shape index: {}]
  %s4 = inlined_call_operand.vmem [shape: f32[64,1], index: 4, kind: input, shape index: {}]
  %s5 = inlined_call_operand.vmem [shape: bf16[8,64], index: 5, kind: input, shape index: {}]
  %s6 = inlined_call_operand.vmem [shape: f32[8,1], index: 6, kind: input, shape index: {}]
  %s7 = inlined_call_operand.hbm [shape: f32[8,128], index: 7, kind: output, shape index: {}]
  %s8 = sld [smem:[#allocation0]]
  $region38: #{tpu_custom_call.1} parent=0
    _
  %s10 = ssub.s32 1, %s8
  %s11 = scalar_select 0, %s10, %s8
  $region1: #{tpu_custom_call.1} parent=0
    #allocation2 [shape = 'u8[4096]{0}', space=vmem, size = 0x1000, scoped, tag = 'output window, operand 0, single buffered']
    #allocation3 [shape = 's32[1]{0}', space=sflag, size = 0x4, scoped, tag = 'scoped memory for tpu_custom_call.1']
    %12 = vsyncpa [#allocation3], 0
    // Predicated region
    $region2: #{tpu_custom_call.1} parent=1 // pred_check
      _
    $region3: #{tpu_custom_call.1} parent=1 // pred_check_branch
      %14 = sbr.rel (0) target = $region5
    $region4: #{tpu_custom_call.1} parent=1 // pred_region
      _
    $region5: #{tpu_custom_call.1} parent=1 // pred_fallthru
      _
    // Predicated region
    $region6: #{tpu_custom_call.1} parent=1 // pred_check
      _
    $region7: #{tpu_custom_call.1} parent=1 // pred_check_branch
      %16 = sbr.rel (0) target = $region9
    $region8: #{tpu_custom_call.1} parent=1 // pred_region
      _
    $region9: #{tpu_custom_call.1} parent=1 // pred_fallthru
      _
    // Predicated region
    $region10: #{tpu_custom_call.1} parent=1 // pred_check
      _
    $region11: #{tpu_custom_call.1} parent=1 // pred_check_branch
      %18 = sbr.rel (0) target = $region13
    $region12: #{tpu_custom_call.1} parent=1 // pred_region
      _
    $region13: #{tpu_custom_call.1} parent=1 // pred_fallthru
      _
    // Predicated region
    $region14: #{tpu_custom_call.1} parent=1 // pred_check
      _
    $region15: #{tpu_custom_call.1} parent=1 // pred_check_branch
      %20 = sbr.rel (0) target = $region17
    $region16: #{tpu_custom_call.1} parent=1 // pred_region
      _
    $region17: #{tpu_custom_call.1} parent=1 // pred_fallthru
      _
    // Predicated region
    $region18: #{tpu_custom_call.1} parent=1 // pred_check
      _
    $region19: #{tpu_custom_call.1} parent=1 // pred_check_branch
      %22 = sbr.rel (0) target = $region21
    $region20: #{tpu_custom_call.1} parent=1 // pred_region
      _
    $region21: #{tpu_custom_call.1} parent=1 // pred_fallthru
      _
    // Predicated region
    $region22: #{tpu_custom_call.1} parent=1 // pred_check
      _
    $region23: #{tpu_custom_call.1} parent=1 // pred_check_branch
      %24 = sbr.rel (0) target = $region25
    $region24: #{tpu_custom_call.1} parent=1 // pred_region
      _
    $region25: #{tpu_custom_call.1} parent=1 // pred_fallthru
      _
    // Predicated region
    $region26: #{tpu_custom_call.1} parent=1 // pred_check
      _
    $region27: #{tpu_custom_call.1} parent=1 // pred_check_branch
      %26 = sbr.rel (0) target = $region29
    $region28: #{tpu_custom_call.1} parent=1 // pred_region
      _
    $region29: #{tpu_custom_call.1} parent=1 // pred_fallthru
      _
    %v28 = vld [vmem:[%s0] sm:$0xff]
    %v29 = vpack.c.bf16 %v28, %v28
    %v30 = vld [vmem:[%s1] sm:$0xf]
    %v31 = vld [vmem:[%s1 + $0x4] sm:$0xf]
    %v32 = vld [vmem:[%s1 + $0x8] sm:$0xf]
    %v33 = vld [vmem:[%s1 + $0xc] sm:$0xf]
    %v34 = vld [vmem:[%s1 + $0x10] sm:$0xf]
    %v35 = vld [vmem:[%s1 + $0x14] sm:$0xf]
    %v36 = vld [vmem:[%s1 + $0x18] sm:$0xf]
    %v37 = vld [vmem:[%s1 + $0x1c] sm:$0xf]
    %v38 = vld [vmem:[%s2] sm:$0xff]
    %v39 = vld [vmem:[%s2 + $0x8] sm:$0xff]
    %v40 = vld [vmem:[%s2 + $0x10] sm:$0xff]
    %v41 = vld [vmem:[%s2 + $0x18] sm:$0xff]
    %v42 = vld [vmem:[%s2 + $0x20] sm:$0xff]
    %v43 = vld [vmem:[%s2 + $0x28] sm:$0xff]
    %v44 = vld [vmem:[%s2 + $0x30] sm:$0xff]
    %v45 = vld [vmem:[%s2 + $0x38] sm:$0xff]
    %47 = vset.pattern.permute.xlu0 0
    %48 = vperm.xlu0 %47, %v38
    %v49 = vpop.permute.xlu0 %48
    %52 = vset.pattern.permute.xlu0 0
    %53 = vperm.xlu0 %52, %v39
    %v54 = vpop.permute.xlu0 %53
    %57 = vset.pattern.permute.xlu0 0
    %58 = vperm.xlu0 %57, %v40
    %v59 = vpop.permute.xlu0 %58
    %62 = vset.pattern.permute.xlu0 0
    %63 = vperm.xlu0 %62, %v41
    %v64 = vpop.permute.xlu0 %63
    %67 = vset.pattern.permute.xlu0 0
    %68 = vperm.xlu0 %67, %v42
    %v69 = vpop.permute.xlu0 %68
    %72 = vset.pattern.permute.xlu0 0
    %73 = vperm.xlu0 %72, %v43
    %v74 = vpop.permute.xlu0 %73
    %77 = vset.pattern.permute.xlu0 0
    %78 = vperm.xlu0 %77, %v44
    %v79 = vpop.permute.xlu0 %78
    %82 = vset.pattern.permute.xlu0 0
    %83 = vperm.xlu0 %82, %v45
    %v84 = vpop.permute.xlu0 %83
    %v94 = vunpack.c.l.b16 %v30
    %v95 = vunpack.c.l.b16 %v31
    %v96 = vunpack.c.l.b16 %v32
    %v97 = vunpack.c.l.b16 %v33
    %v98 = vunpack.c.l.b16 %v34
    %v99 = vunpack.c.l.b16 %v35
    %v100 = vunpack.c.l.b16 %v36
    %v101 = vunpack.c.l.b16 %v37
    %v102 = vpack.c.b16 %v95, %v94
    %v103 = vpack.c.b16 %v97, %v96
    %v104 = vpack.c.b16 %v99, %v98
    %v105 = vpack.c.b16 %v101, %v100
    %vm106 = vcmask 64512
    %v108 = vsel %vm106, %v102, 0
    %v111 = vsel %vm106, %v103, 0
    %v114 = vsel %vm106, %v104, 0
    %v117 = vsel %vm106, %v105, 0
    %vm119 = vcmask 1043456
    %v121 = vsel %vm119, %v29, 0
    %123 = vmatprep.subr.bf16.mxu0 0
    %124 = vmatpush1.bf16.msra.mxu0 %v121
    %125 = vmatprep.subr.bf16.mxu0 0
    %126 = vmatpush1.bf16.msra.mxu0 0
    %127 = vmatprep.subr.bf16.mxu0 0
    %128 = vmatpush1.bf16.msra.mxu0 0
    %129 = vmatprep.subr.bf16.mxu0 0
    %130 = vmatpush1.bf16.msra.mxu0 0
    %131 = vmatprep.subr.bf16.mxu0 0
    %132 = vmatpush1.bf16.msra.mxu0 0
    %133 = vmatprep.subr.bf16.mxu0 0
    %134 = vmatpush1.bf16.msra.mxu0 0
    %135 = vmatprep.subr.bf16.mxu0 0
    %136 = vmatpush1.bf16.msra.mxu0 0
    %137 = vmatprep.subr.bf16.mxu0 0
    %138 = vmatpush1.bf16.msra.mxu0 0
    %139 = vmatprep.subr.bf16.mxu0 0
    %140 = vmatpush1.bf16.msra.mxu0 0
    %141 = vmatprep.subr.bf16.mxu0 0
    %142 = vmatpush1.bf16.msra.mxu0 0
    %143 = vmatprep.subr.bf16.mxu0 0
    %144 = vmatpush1.bf16.msra.mxu0 0
    %145 = vmatprep.subr.bf16.mxu0 0
    %146 = vmatpush1.bf16.msra.mxu0 0
    %147 = vmatprep.subr.bf16.mxu0 0
    %148 = vmatpush1.bf16.msra.mxu0 0
    %149 = vmatprep.subr.bf16.mxu0 0
    %150 = vmatpush1.bf16.msra.mxu0 0
    %151 = vmatprep.subr.bf16.mxu0 0
    %152 = vmatpush1.bf16.msra.mxu0 0
    %153 = vmatprep.subr.bf16.mxu0 0
    %154 = vmatpush1.bf16.msra.mxu0 0
    %155 = vmatprep.mubr.bf16.mxu0 0
    %156 = vmatmul.mubr.bf16.gmra.mrb[0].mxu0 %v108
    %v157 = vpop.f32.mrb[0].mxu0
    %v158 = vadd.f32 %v49, %v157
    %v159 = vpop.f32.mrb[0].mxu0
    %v160 = vpop.f32.mrb[0].mxu0
    %v161 = vadd.f32 %v54, %v160
    %v162 = vpop.f32.mrb[0].mxu0
    %163 = vmatprep.mubr.bf16.mxu0 0
    %164 = vmatmul.mubr.bf16.gmra.mrb[0].mxu0 %v111
    %v165 = vpop.f32.mrb[0].mxu0
    %v166 = vadd.f32 %v59, %v165
    %v167 = vpop.f32.mrb[0].mxu0
    %v168 = vpop.f32.mrb[0].mxu0
    %v169 = vadd.f32 %v64, %v168
    %v170 = vpop.f32.mrb[0].mxu0
    %171 = vmatprep.mubr.bf16.mxu0 0
    %172 = vmatmul.mubr.bf16.gmra.mrb[0].mxu0 %v114
    %v173 = vpop.f32.mrb[0].mxu0
    %v174 = vadd.f32 %v69, %v173
    %v175 = vpop.f32.mrb[0].mxu0
    %v176 = vpop.f32.mrb[0].mxu0
    %v177 = vadd.f32 %v74, %v176
    %v178 = vpop.f32.mrb[0].mxu0
    %179 = vmatprep.mubr.bf16.mxu0 0
    %180 = vmatmul.mubr.bf16.gmra.mrb[0].mxu0 %v117
    %v181 = vpop.f32.mrb[0].mxu0
    %v182 = vadd.f32 %v79, %v181
    %v183 = vpop.f32.mrb[0].mxu0
    %v184 = vpop.f32.mrb[0].mxu0
    %v185 = vadd.f32 %v84, %v184
    %v186 = vpop.f32.mrb[0].mxu0
    %187 = vdwg.mxu0
    %v188 = vmax.f32 %v158, 0.0
    %v189 = vmax.f32 %v161, 0.0
    %v190 = vmax.f32 %v166, 0.0
    %v191 = vmax.f32 %v169, 0.0
    %v192 = vmax.f32 %v174, 0.0
    %v193 = vmax.f32 %v177, 0.0
    %v194 = vmax.f32 %v182, 0.0
    %v195 = vmax.f32 %v185, 0.0
    %v196 = vld [vmem:[%s3] sm:$0xf]
    %v197 = vld [vmem:[%s3 + $0x4] sm:$0xf]
    %v198 = vld [vmem:[%s3 + $0x8] sm:$0xf]
    %v199 = vld [vmem:[%s3 + $0xc] sm:$0xf]
    %v200 = vld [vmem:[%s3 + $0x10] sm:$0xf]
    %v201 = vld [vmem:[%s3 + $0x14] sm:$0xf]
    %v202 = vld [vmem:[%s3 + $0x18] sm:$0xf]
    %v203 = vld [vmem:[%s3 + $0x1c] sm:$0xf]
    %v204 = vpack.c.bf16 %v189, %v188
    %v205 = vpack.c.bf16 %v191, %v190
    %v206 = vpack.c.bf16 %v193, %v192
    %v207 = vpack.c.bf16 %v195, %v194
    %v208 = vld [vmem:[%s4] sm:$0xff]
    %v209 = vld [vmem:[%s4 + $0x8] sm:$0xff]
    %v210 = vld [vmem:[%s4 + $0x10] sm:$0xff]
    %v211 = vld [vmem:[%s4 + $0x18] sm:$0xff]
    %v212 = vld [vmem:[%s4 + $0x20] sm:$0xff]
    %v213 = vld [vmem:[%s4 + $0x28] sm:$0xff]
    %v214 = vld [vmem:[%s4 + $0x30] sm:$0xff]
    %v215 = vld [vmem:[%s4 + $0x38] sm:$0xff]
    %217 = vset.pattern.permute.xlu0 0
    %218 = vperm.xlu0 %217, %v208
    %v219 = vpop.permute.xlu0 %218
    %222 = vset.pattern.permute.xlu0 0
    %223 = vperm.xlu0 %222, %v209
    %v224 = vpop.permute.xlu0 %223
    %227 = vset.pattern.permute.xlu0 0
    %228 = vperm.xlu0 %227, %v210
    %v229 = vpop.permute.xlu0 %228
    %232 = vset.pattern.permute.xlu0 0
    %233 = vperm.xlu0 %232, %v211
    %v234 = vpop.permute.xlu0 %233
    %237 = vset.pattern.permute.xlu0 0
    %238 = vperm.xlu0 %237, %v212
    %v239 = vpop.permute.xlu0 %238
    %242 = vset.pattern.permute.xlu0 0
    %243 = vperm.xlu0 %242, %v213
    %v244 = vpop.permute.xlu0 %243
    %247 = vset.pattern.permute.xlu0 0
    %248 = vperm.xlu0 %247, %v214
    %v249 = vpop.permute.xlu0 %248
    %252 = vset.pattern.permute.xlu0 0
    %253 = vperm.xlu0 %252, %v215
    %v254 = vpop.permute.xlu0 %253
    %v264 = vunpack.c.l.b16 %v196
    %v265 = vunpack.c.l.b16 %v197
    %v266 = vunpack.c.l.b16 %v198
    %v267 = vunpack.c.l.b16 %v199
    %v268 = vunpack.c.l.b16 %v200
    %v269 = vunpack.c.l.b16 %v201
    %v270 = vunpack.c.l.b16 %v202
    %v271 = vunpack.c.l.b16 %v203
    %v272 = vpack.c.b16 %v265, %v264
    %v273 = vpack.c.b16 %v267, %v266
    %v274 = vpack.c.b16 %v269, %v268
    %v275 = vpack.c.b16 %v271, %v270
    %vm276 = vcmask 523264
    %v278 = vsel %vm276, %v272, 0
    %v281 = vsel %vm276, %v273, 0
    %v284 = vsel %vm276, %v274, 0
    %v287 = vsel %vm276, %v275, 0
    %289 = vmatprep.subr.bf16.mxu0 0
    %290 = vmatpush1.bf16.msra.mxu0 %v204
    %291 = vmatprep.subr.bf16.mxu0 0
    %292 = vmatpush1.bf16.msra.mxu0 %v205
    %293 = vmatprep.subr.bf16.mxu0 0
    %294 = vmatpush1.bf16.msra.mxu0 %v206
    %295 = vmatprep.subr.bf16.mxu0 0
    %296 = vmatpush1.bf16.msra.mxu0 %v207
    %297 = vmatprep.subr.bf16.mxu0 0
    %298 = vmatpush1.bf16.msra.mxu0 0
    %299 = vmatprep.subr.bf16.mxu0 0
    %300 = vmatpush1.bf16.msra.mxu0 0
    %301 = vmatprep.subr.bf16.mxu0 0
    %302 = vmatpush1.bf16.msra.mxu0 0
    %303 = vmatprep.subr.bf16.mxu0 0
    %304 = vmatpush1.bf16.msra.mxu0 0
    %305 = vmatprep.subr.bf16.mxu0 0
    %306 = vmatpush1.bf16.msra.mxu0 0
    %307 = vmatprep.subr.bf16.mxu0 0
    %308 = vmatpush1.bf16.msra.mxu0 0
    %309 = vmatprep.subr.bf16.mxu0 0
    %310 = vmatpush1.bf16.msra.mxu0 0
    %311 = vmatprep.subr.bf16.mxu0 0
    %312 = vmatpush1.bf16.msra.mxu0 0
    %313 = vmatprep.subr.bf16.mxu0 0
    %314 = vmatpush1.bf16.msra.mxu0 0
    %315 = vmatprep.subr.bf16.mxu0 0
    %316 = vmatpush1.bf16.msra.mxu0 0
    %317 = vmatprep.subr.bf16.mxu0 0
    %318 = vmatpush1.bf16.msra.mxu0 0
    %319 = vmatprep.subr.bf16.mxu0 0
    %320 = vmatpush1.bf16.msra.mxu0 0
    %321 = vmatprep.mubr.bf16.mxu0 0
    %322 = vmatmul.mubr.bf16.gmra.mrb[0].mxu0 %v278
    %v323 = vpop.f32.mrb[0].mxu0
    %v324 = vadd.f32 %v219, %v323
    %v325 = vpop.f32.mrb[0].mxu0
    %v326 = vpop.f32.mrb[0].mxu0
    %v327 = vadd.f32 %v224, %v326
    %v328 = vpop.f32.mrb[0].mxu0
    %329 = vmatprep.mubr.bf16.mxu0 0
    %330 = vmatmul.mubr.bf16.gmra.mrb[0].mxu0 %v281
    %v331 = vpop.f32.mrb[0].mxu0
    %v332 = vadd.f32 %v229, %v331
    %v333 = vpop.f32.mrb[0].mxu0
    %v334 = vpop.f32.mrb[0].mxu0
    %v335 = vadd.f32 %v234, %v334
    %v336 = vpop.f32.mrb[0].mxu0
    %337 = vmatprep.mubr.bf16.mxu0 0
    %338 = vmatmul.mubr.bf16.gmra.mrb[0].mxu0 %v284
    %v339 = vpop.f32.mrb[0].mxu0
    %v340 = vadd.f32 %v239, %v339
    %v341 = vpop.f32.mrb[0].mxu0
    %v342 = vpop.f32.mrb[0].mxu0
    %v343 = vadd.f32 %v244, %v342
    %v344 = vpop.f32.mrb[0].mxu0
    %345 = vmatprep.mubr.bf16.mxu0 0
    %346 = vmatmul.mubr.bf16.gmra.mrb[0].mxu0 %v287
    %v347 = vpop.f32.mrb[0].mxu0
    %v348 = vadd.f32 %v249, %v347
    %v349 = vpop.f32.mrb[0].mxu0
    %v350 = vpop.f32.mrb[0].mxu0
    %v351 = vadd.f32 %v254, %v350
    %v352 = vpop.f32.mrb[0].mxu0
    %353 = vdwg.mxu0
    %v354 = vmax.f32 %v324, 0.0
    %v355 = vmax.f32 %v327, 0.0
    %v356 = vmax.f32 %v332, 0.0
    %v357 = vmax.f32 %v335, 0.0
    %v358 = vmax.f32 %v340, 0.0
    %v359 = vmax.f32 %v343, 0.0
    %v360 = vmax.f32 %v348, 0.0
    %v361 = vmax.f32 %v351, 0.0
    %v362 = vld [vmem:[%s5] sm:$0xf]
    %v363 = vpack.c.bf16 %v355, %v354
    %v364 = vpack.c.bf16 %v357, %v356
    %v365 = vpack.c.bf16 %v359, %v358
    %v366 = vpack.c.bf16 %v361, %v360
    %v367 = vld [vmem:[%s6] sm:$0xff]
    %369 = vset.pattern.permute.xlu0 0
    %370 = vperm.xlu0 %369, %v367
    %v371 = vpop.permute.xlu0 %370
    %v374 = vsel %vm276, %v362, 0
    %376 = vmatprep.subr.bf16.mxu0 0
    %377 = vmatpush1.bf16.msra.mxu0 %v363
    %378 = vmatprep.subr.bf16.mxu0 0
    %379 = vmatpush1.bf16.msra.mxu0 %v364
    %380 = vmatprep.subr.bf16.mxu0 0
    %381 = vmatpush1.bf16.msra.mxu0 %v365
    %382 = vmatprep.subr.bf16.mxu0 0
    %383 = vmatpush1.bf16.msra.mxu0 %v366
    %384 = vmatprep.subr.bf16.mxu0 0
    %385 = vmatpush1.bf16.msra.mxu0 0
    %386 = vmatprep.subr.bf16.mxu0 0
    %387 = vmatpush1.bf16.msra.mxu0 0
    %388 = vmatprep.subr.bf16.mxu0 0
    %389 = vmatpush1.bf16.msra.mxu0 0
    %390 = vmatprep.subr.bf16.mxu0 0
    %391 = vmatpush1.bf16.msra.mxu0 0
    %392 = vmatprep.subr.bf16.mxu0 0
    %393 = vmatpush1.bf16.msra.mxu0 0
    %394 = vmatprep.subr.bf16.mxu0 0
    %395 = vmatpush1.bf16.msra.mxu0 0
    %396 = vmatprep.subr.bf16.mxu0 0
    %397 = vmatpush1.bf16.msra.mxu0 0
    %398 = vmatprep.subr.bf16.mxu0 0
    %399 = vmatpush1.bf16.msra.mxu0 0
    %400 = vmatprep.subr.bf16.mxu0 0
    %401 = vmatpush1.bf16.msra.mxu0 0
    %402 = vmatprep.subr.bf16.mxu0 0
    %403 = vmatpush1.bf16.msra.mxu0 0
    %404 = vmatprep.subr.bf16.mxu0 0
    %405 = vmatpush1.bf16.msra.mxu0 0
    %406 = vmatprep.subr.bf16.mxu0 0
    %407 = vmatpush1.bf16.msra.mxu0 0
    %408 = vmatprep.mubr.bf16.mxu0 0
    %409 = vmatmul.mubr.bf16.gmra.mrb[0].mxu0 %v374
    %v410 = vpop.f32.mrb[0].mxu0
    %v411 = vadd.f32 %v371, %v410
    %v412 = vpop.f32.mrb[0].mxu0
    %v413 = vpop.f32.mrb[0].mxu0
    %v414 = vpop.f32.mrb[0].mxu0
    %415 = vdwg.mxu0
    %416 = vst [vmem:[#allocation2] sm:$0xff] %v411
    // Predicated region
    $region30: #{tpu_custom_call.1} parent=1 // pred_check
      _
    $region31: #{tpu_custom_call.1} parent=1 // pred_check_branch
      %418 = sbr.rel (0) target = $region33
    $region32: #{tpu_custom_call.1} parent=1 // pred_region
      %s420 = ssub.s32 128, 128
      %421 = vsyncadd [#allocation3], %s420
      %s423 = sshll.u32 [#allocation2], 4
      %s424 = int_to_ptr.vmem [resolvable:$true] %s423
      %426 = dma.vmem_to_hbm [thread:$0]  %s424, 128, %s7, [#allocation3]
    $region33: #{tpu_custom_call.1} parent=1 // pred_fallthru
      _
    // Predicated region
    $region34: #{tpu_custom_call.1} parent=1 // pred_check
      _
    $region35: #{tpu_custom_call.1} parent=1 // pred_check_branch
      %428 = sbr.rel (0) target = $region37
    $region36: #{tpu_custom_call.1} parent=1 // pred_region
      %429 = dma.done [#allocation3], 128
    $region37: #{tpu_custom_call.1} parent=1 // pred_fallthru
      _
    %430 = vsyncpa [#allocation3], 1

</llo_original>
